<compile_context>
chip_gen: v7x
topology: tpu7x:2x2x1
jax: 0.10.0
libtpu: 0.0.40
codegen_flags: <defaults>
</compile_context>

<pallas_src>
import jax
import jax.numpy as jnp
from jax.experimental import pallas as pl
from jax.experimental.pallas import tpu as pltpu

INPUT_DIM = 512
HIDDEN_DIM = 256
OUTPUT_DIM = 768


def _round_up(x, m):
    return (x + m - 1) // m * m


def _mlp_kernel(x_ref, w1_ref, b1_ref, w2_ref, b2_ref, o_ref):
    # Cast the streamed f32 x tile to bf16 on-chip (VPU), matmul on the MXU with
    # f32 accumulation; bias add + ReLU in f32.
    x = x_ref[...].astype(jnp.bfloat16)
    h = jnp.dot(x, w1_ref[...], preferred_element_type=jnp.float32)
    h = jnp.maximum(h + b1_ref[...], 0.0)
    # fc2: downcast the activation to bf16 for the MXU, accumulate in f32.
    y = jnp.dot(h.astype(jnp.bfloat16), w2_ref[...],
                preferred_element_type=jnp.float32)
    o_ref[...] = (y + b2_ref[...]).astype(o_ref.dtype)


def prepare_params(w1, b1, w2, b2):
    """Cast parameters once (module-init style): bf16 MXU weights, f32 biases."""
    return (w1.astype(jnp.bfloat16), b1.astype(jnp.float32),
            w2.astype(jnp.bfloat16), b2.astype(jnp.float32))


def direct_decoder(x, w1_bf, b1_f, w2_bf, b2_f, *, tb=512, out_dtype=None):
    """x: [B, INPUT_DIM]; w1_bf: [INPUT_DIM, HIDDEN_DIM] bf16; b1_f: [1, HIDDEN_DIM] f32;
    w2_bf: [HIDDEN_DIM, OUTPUT_DIM] bf16; b2_f: [1, OUTPUT_DIM] f32
    -> [B, OUTPUT_DIM] (out_dtype or x.dtype)."""
    B, in_dim = x.shape
    assert in_dim == w1_bf.shape[0]
    hid = w1_bf.shape[1]
    out_dim = w2_bf.shape[1]
    out_dtype = out_dtype if out_dtype is not None else x.dtype

    # Effective batch tile: never larger than the (sublane-padded) batch.
    tb_eff = min(tb, _round_up(B, 8))
    # If the whole (large) batch fits in one tile, split it so the "parallel"
    # grid has >= 2 steps and both v7x TensorCores get work.
    if pl.cdiv(B, tb_eff) == 1 and B >= 256:
        tb_eff = _round_up(pl.cdiv(B, 2), 8)

    grid = (pl.cdiv(B, tb_eff),)  # partial trailing block handled by Pallas masking
    return pl.pallas_call(
        _mlp_kernel,
        out_shape=jax.ShapeDtypeStruct((B, out_dim), out_dtype),
        grid_spec=pltpu.PrefetchScalarGridSpec(
            num_scalar_prefetch=0,
            grid=grid,
            in_specs=[
                pl.BlockSpec((tb_eff, in_dim), lambda i: (i, 0)),   # x tile (streamed, orig dtype)
                pl.BlockSpec((in_dim, hid), lambda i: (0, 0)),      # w1 (resident)
                pl.BlockSpec((1, hid), lambda i: (0, 0)),           # b1 (resident)
                pl.BlockSpec((hid, out_dim), lambda i: (0, 0)),     # w2 (resident)
                pl.BlockSpec((1, out_dim), lambda i: (0, 0)),       # b2 (resident)
            ],
            out_specs=pl.BlockSpec((tb_eff, out_dim), lambda i: (i, 0)),
        ),
        compiler_params=pltpu.CompilerParams(
            # Batch tiles are independent -> shard across TensorCores on v7x.
            dimension_semantics=("parallel",),
        ),
    )(x, w1_bf, b1_f, w2_bf, b2_f)


def _init_params(key):
    """Deterministic init mimicking nn.Linear's U(-1/sqrt(fan_in), 1/sqrt(fan_in))."""
    k1, k2, k3, k4 = jax.random.split(key, 4)
    bound1 = 1.0 / jnp.sqrt(INPUT_DIM)
    bound2 = 1.0 / jnp.sqrt(HIDDEN_DIM)
    # Stored already transposed relative to PyTorch: [in, out].
    w1 = jax.random.uniform(k1, (INPUT_DIM, HIDDEN_DIM), jnp.float32, -bound1, bound1)
    b1 = jax.random.uniform(k2, (1, HIDDEN_DIM), jnp.float32, -bound1, bound1)
    w2 = jax.random.uniform(k3, (HIDDEN_DIM, OUTPUT_DIM), jnp.float32, -bound2, bound2)
    b2 = jax.random.uniform(k4, (1, OUTPUT_DIM), jnp.float32, -bound2, bound2)
    return w1, b1, w2, b2


def _reference(x, w1, b1, w2, b2):
    h = jnp.maximum(x @ w1 + b1, 0.0)
    return h @ w2 + b2


if __name__ == "__main__":
    key = jax.random.PRNGKey(0)
    kx, kp = jax.random.split(key)
    w1, b1, w2, b2 = _init_params(kp)
    params = prepare_params(w1, b1, w2, b2)

    # Small batch (single grid step, partial edge block since 4 < 8-row tile).
    B = 4
    x = jax.random.normal(kx, (B, INPUT_DIM), jnp.float32)
    out = jax.block_until_ready(direct_decoder(x, *params))
    ref = _reference(x, w1, b1, w2, b2)
    assert out.shape == (B, OUTPUT_DIM) and out.dtype == x.dtype
    # bf16 matmuls with f32 accumulation vs. an f32 reference -> loose tolerance.
    assert jnp.allclose(out, ref, atol=3e-2, rtol=3e-2), \
        float(jnp.max(jnp.abs(out - ref)))

    # Batch that is not a multiple of the sublane tile (exercises edge masking).
    B2 = 12
    x2 = jax.random.normal(kx, (B2, INPUT_DIM), jnp.float32)
    out2 = jax.block_until_ready(direct_decoder(x2, *params))
    ref2 = _reference(x2, w1, b1, w2, b2)
    assert out2.shape == (B2, OUTPUT_DIM)
    assert jnp.allclose(out2, ref2, atol=3e-2, rtol=3e-2)

    # Multi-grid-step path with a partial trailing block (tb=8 -> grid=3, last block 4 rows).
    B3 = 20
    x3 = jax.random.normal(kx, (B3, INPUT_DIM), jnp.float32)
    out3 = jax.block_until_ready(direct_decoder(x3, *params, tb=8))
    ref3 = _reference(x3, w1, b1, w2, b2)
    assert out3.shape == (B3, OUTPUT_DIM)
    assert jnp.allclose(out3, ref3, atol=3e-2, rtol=3e-2)

    print("KERNEL_OK")
</pallas_src>

<mosaic_0001>
module attributes {stable_mosaic.version = 11 : i64} {
  func.func @_mlp_kernel(%arg0: i32, %arg1: memref<8x512xf32, #tpu.memory_space<vmem>>, %arg2: memref<512x256xbf16, #tpu.memory_space<vmem>>, %arg3: memref<1x256xf32, #tpu.memory_space<vmem>>, %arg4: memref<256x768xbf16, #tpu.memory_space<vmem>>, %arg5: memref<1x768xf32, #tpu.memory_space<vmem>>, %arg6: memref<8x768xf32, #tpu.memory_space<vmem>>) attributes {dimension_semantics = [#tpu.dimension_semantics<parallel>], iteration_bounds = array<i64: 1>, scalar_prefetch = 0 : i64, scratch_operands = 0 : i64, tpu.core_type = #tpu.core_type<tc>, window_params = [{transform_indices = @transform_0, window_bounds = array<i64: 8, 512>}, {pipeline_mode = #tpu.pipeline_mode<synchronous>, transform_indices = @transform_1, window_bounds = array<i64: 512, 256>}, {pipeline_mode = #tpu.pipeline_mode<synchronous>, transform_indices = @transform_2, window_bounds = array<i64: 1, 256>}, {pipeline_mode = #tpu.pipeline_mode<synchronous>, transform_indices = @transform_3, window_bounds = array<i64: 256, 768>}, {pipeline_mode = #tpu.pipeline_mode<synchronous>, transform_indices = @transform_4, window_bounds = array<i64: 1, 768>}, {transform_indices = @transform_5, window_bounds = array<i64: 8, 768>}]} {
    %c0 = arith.constant 0 : index
    %c0_0 = arith.constant 0 : index
    %0 = vector.load %arg1[%c0, %c0_0] : memref<8x512xf32, #tpu.memory_space<vmem>>, vector<8x512xf32>
    %1 = arith.truncf %0 : vector<8x512xf32> to vector<8x512xbf16>
    %c0_1 = arith.constant 0 : index
    %c0_2 = arith.constant 0 : index
    %2 = vector.load %arg2[%c0_1, %c0_2] : memref<512x256xbf16, #tpu.memory_space<vmem>>, vector<512x256xbf16>
    %cst = arith.constant dense<0.000000e+00> : vector<8x256xf32>
    %3 = tpu.matmul %1, %2, %cst {dimension_numbers = #tpu.dot_dimension_numbers<[1], [0], [0], [1], [0, 0, 1, 1], [], []>} : vector<8x512xbf16>, vector<512x256xbf16>, vector<8x256xf32> -> vector<8x256xf32>
    %c0_3 = arith.constant 0 : index
    %c0_4 = arith.constant 0 : index
    %4 = vector.load %arg3[%c0_3, %c0_4] : memref<1x256xf32, #tpu.memory_space<vmem>>, vector<1x256xf32>
    %5 = vector.broadcast %4 : vector<1x256xf32> to vector<8x256xf32>
    %6 = arith.addf %3, %5 : vector<8x256xf32>
    %cst_5 = arith.constant 0.000000e+00 : f32
    %7 = vector.broadcast %cst_5 : f32 to vector<8x256xf32>
    %8 = arith.maximumf %6, %7 : vector<8x256xf32>
    %9 = arith.truncf %8 : vector<8x256xf32> to vector<8x256xbf16>
    %c0_6 = arith.constant 0 : index
    %c0_7 = arith.constant 0 : index
    %10 = vector.load %arg4[%c0_6, %c0_7] : memref<256x768xbf16, #tpu.memory_space<vmem>>, vector<256x768xbf16>
    %cst_8 = arith.constant dense<0.000000e+00> : vector<8x768xf32>
    %11 = tpu.matmul %9, %10, %cst_8 {dimension_numbers = #tpu.dot_dimension_numbers<[1], [0], [0], [1], [0, 0, 1, 1], [], []>} : vector<8x256xbf16>, vector<256x768xbf16>, vector<8x768xf32> -> vector<8x768xf32>
    %c0_9 = arith.constant 0 : index
    %c0_10 = arith.constant 0 : index
    %12 = vector.load %arg5[%c0_9, %c0_10] : memref<1x768xf32, #tpu.memory_space<vmem>>, vector<1x768xf32>
    %13 = vector.broadcast %12 : vector<1x768xf32> to vector<8x768xf32>
    %14 = arith.addf %11, %13 : vector<8x768xf32>
    %c0_11 = arith.constant 0 : index
    %c0_12 = arith.constant 0 : index
    %15 = vector.load %arg6[%c0_11, %c0_12] : memref<8x768xf32, #tpu.memory_space<vmem>>, vector<8x768xf32>
    tpu.vector_store %arg6[%c0_11, %c0_12], %14 {strides = array<i32>} : memref<8x768xf32, #tpu.memory_space<vmem>>, vector<8x768xf32>,
    return
  }
  func.func @transform_0(%arg0: i32) -> (i32, i32) {
    %c0_i32 = arith.constant 0 : i32
    %c0_i32_0 = arith.constant 0 : i32
    return %arg0, %c0_i32 : i32, i32
  }
  func.func @transform_1(%arg0: i32) -> (i32, i32) {
    %c0_i32 = arith.constant 0 : i32
    %c0_i32_0 = arith.constant 0 : i32
    %c0_i32_1 = arith.constant 0 : i32
    return %c0_i32, %c0_i32_0 : i32, i32
  }
  func.func @transform_2(%arg0: i32) -> (i32, i32) {
    %c0_i32 = arith.constant 0 : i32
    %c0_i32_0 = arith.constant 0 : i32
    %c0_i32_1 = arith.constant 0 : i32
    return %c0_i32, %c0_i32_0 : i32, i32
  }
  func.func @transform_3(%arg0: i32) -> (i32, i32) {
    %c0_i32 = arith.constant 0 : i32
    %c0_i32_0 = arith.constant 0 : i32
    %c0_i32_1 = arith.constant 0 : i32
    return %c0_i32, %c0_i32_0 : i32, i32
  }
  func.func @transform_4(%arg0: i32) -> (i32, i32) {
    %c0_i32 = arith.constant 0 : i32
    %c0_i32_0 = arith.constant 0 : i32
    %c0_i32_1 = arith.constant 0 : i32
    return %c0_i32, %c0_i32_0 : i32, i32
  }
  func.func @transform_5(%arg0: i32) -> (i32, i32) {
    %c0_i32 = arith.constant 0 : i32
    %c0_i32_0 = arith.constant 0 : i32
    return %arg0, %c0_i32 : i32, i32
  }
}

</mosaic_0001>

<llo_original>
// kernel: tpu_custom_call.1
$region0: #{tpu_custom_call.1}
  #allocation0 [shape = 'u32[]', space=smem, size = 0x4, offset = 0x4, fixed_abs, tag = 'smem constant byte address 0x4 - core index']
  #allocation1 [shape = 'u32[144,128]{1,0:T(1,128)}', space=vmem, size = 0x12000, scoped, tag = 'internal scratch']
  %s0 = inlined_call_operand.hbm [shape: f32[4,512], index: 0, kind: input, shape index: {}]
  %s1 = inlined_call_operand.hbm [shape: bf16[512,256], index: 1, kind: input, shape index: {}]
  %s2 = inlined_call_operand.vmem [shape: f32[1,256], index: 2, kind: input, shape index: {}]
  %s3 = inlined_call_operand.hbm [shape: bf16[256,768], index: 3, kind: input, shape index: {}]
  %s4 = inlined_call_operand.vmem [shape: f32[1,768], index: 4, kind: input, shape index: {}]
  %s5 = inlined_call_operand.hbm [shape: f32[4,768], index: 5, kind: output, shape index: {}]
  %s6 = sld [smem:[#allocation0]]
  $region42: #{tpu_custom_call.1} parent=0
    _
  %s8 = ssub.s32 1, %s6
  %s9 = scalar_select 0, %s8, %s6
  $region1: #{tpu_custom_call.1} parent=0
    #allocation2 [shape = 'u8[16384]{0}', space=vmem, size = 0x4000, scoped, tag = 'input window, operand 0, single buffered']
    #allocation3 [shape = 's32[1]{0}', space=sflag, size = 0x4, scoped, tag = 'scoped memory for tpu_custom_call.1']
    #allocation4 [shape = 's32[1]{0}', space=sflag, size = 0x4, scoped, tag = 'scoped memory for tpu_custom_call.1']
    #allocation5 [shape = 'u8[262144]{0}', space=vmem, size = 0x40000, scoped, tag = 'input window, operand 1, single buffered']
    #allocation6 [shape = 's32[1]{0}', space=sflag, size = 0x4, scoped, tag = 'scoped memory for tpu_custom_call.1']
    #allocation7 [shape = 'u8[393216]{0}', space=vmem, size = 0x60000, scoped, tag = 'input window, operand 3, single buffered']
    #allocation8 [shape = 'u8[24576]{0}', space=vmem, size = 0x6000, scoped, tag = 'output window, operand 0, single buffered']
    %10 = vsyncpa [#allocation3], 0
    %11 = vsyncpa [#allocation6], 0
    %12 = vsyncpa [#allocation4], 0
    // Predicated region
    $region2: #{tpu_custom_call.1} parent=1 // pred_check
      _
    $region3: #{tpu_custom_call.1} parent=1 // pred_check_branch
      %14 = sbr.rel (0) target = $region5
    $region4: #{tpu_custom_call.1} parent=1 // pred_region
      %s16 = ssub.s32 512, 256
      %17 = vsyncadd [#allocation3], %s16
      %s18 = sshll.u32 [#allocation2], 4
      %s19 = int_to_ptr.vmem [resolvable:$true] %s18
      %24 = dma.hbm_to_vmem [thread:$0]  %s0, 256, %s19, [#allocation3], 256, 256, 16
    $region5: #{tpu_custom_call.1} parent=1 // pred_fallthru
      _
    // Predicated region
    $region6: #{tpu_custom_call.1} parent=1 // pred_check
      _
    $region7: #{tpu_custom_call.1} parent=1 // pred_check_branch
      %26 = sbr.rel (0) target = $region9
    $region8: #{tpu_custom_call.1} parent=1 // pred_region
      %s28 = ssub.s32 8192, 8192
      %29 = vsyncadd [#allocation6], %s28
      %s30 = sshll.u32 [#allocation5], 4
      %s31 = int_to_ptr.vmem [resolvable:$true] %s30
      %36 = dma.hbm_to_vmem [thread:$0]  %s1, 8192, %s31, [#allocation6], 128, 128, 8
    $region9: #{tpu_custom_call.1} parent=1 // pred_fallthru
      _
    // Predicated region
    $region10: #{tpu_custom_call.1} parent=1 // pred_check
      _
    $region11: #{tpu_custom_call.1} parent=1 // pred_check_branch
      %38 = sbr.rel (0) target = $region13
    $region12: #{tpu_custom_call.1} parent=1 // pred_region
      _
    $region13: #{tpu_custom_call.1} parent=1 // pred_fallthru
      _
    // Predicated region
    $region14: #{tpu_custom_call.1} parent=1 // pred_check
      _
    $region15: #{tpu_custom_call.1} parent=1 // pred_check_branch
      %40 = sbr.rel (0) target = $region17
    $region16: #{tpu_custom_call.1} parent=1 // pred_region
      %s42 = ssub.s32 12288, 12288
      %43 = vsyncadd [#allocation6], %s42
      %s44 = sshll.u32 [#allocation7], 4
      %s45 = int_to_ptr.vmem [resolvable:$true] %s44
      %50 = dma.hbm_to_vmem [thread:$0]  %s3, 12288, %s45, [#allocation6], 384, 384, 24
    $region17: #{tpu_custom_call.1} parent=1 // pred_fallthru
      _
    // Predicated region
    $region18: #{tpu_custom_call.1} parent=1 // pred_check
      _
    $region19: #{tpu_custom_call.1} parent=1 // pred_check_branch
      %52 = sbr.rel (0) target = $region21
    $region20: #{tpu_custom_call.1} parent=1 // pred_region
      _
    $region21: #{tpu_custom_call.1} parent=1 // pred_fallthru
      _
    // Predicated region
    $region22: #{tpu_custom_call.1} parent=1 // pred_check
      _
    $region23: #{tpu_custom_call.1} parent=1 // pred_check_branch
      %54 = sbr.rel (0) target = $region25
    $region24: #{tpu_custom_call.1} parent=1 // pred_region
      %55 = dma.done [#allocation3], 512
    $region25: #{tpu_custom_call.1} parent=1 // pred_fallthru
      _
    // Predicated region
    $region26: #{tpu_custom_call.1} parent=1 // pred_check
      _
    $region27: #{tpu_custom_call.1} parent=1 // pred_check_branch
      %57 = sbr.rel (0) target = $region29
    $region28: #{tpu_custom_call.1} parent=1 // pred_region
      %58 = dma.done [#allocation6], 8192
    $region29: #{tpu_custom_call.1} parent=1 // pred_fallthru
      _
    // Predicated region
    $region30: #{tpu_custom_call.1} parent=1 // pred_check
      _
    $region31: #{tpu_custom_call.1} parent=1 // pred_check_branch
      %60 = sbr.rel (0) target = $region33
    $region32: #{tpu_custom_call.1} parent=1 // pred_region
      %61 = dma.done [#allocation6], 12288
    $region33: #{tpu_custom_call.1} parent=1 // pred_fallthru
      _
    %v62 = vld [vmem:[#allocation2] sm:$0xff]
    %v63 = vld [vmem:[#allocation2 + $0x8] sm:$0xff]
    %v64 = vld [vmem:[#allocation2 + $0x10] sm:$0xff]
    %v65 = vld [vmem:[#allocation2 + $0x18] sm:$0xff]
    %v70 = vcombine.low %v62, %v64
    %v71 = vcombine.high %v62, %v64
    %v72 = vcombine.low %v63, %v65
    %v73 = vcombine.high %v63, %v65
    %v78 = vpack.c.bf16 %v70, %v70
    %v79 = vpack.c.bf16 %v71, %v71
    %v80 = vpack.c.bf16 %v72, %v72
    %v81 = vpack.c.bf16 %v73, %v73
    %v82 = vld [vmem:[#allocation5] sm:$0xff]
    %v83 = vld [vmem:[#allocation5 + $0x8] sm:$0xff]
    %v84 = vld [vmem:[#allocation5 + $0x10] sm:$0xff]
    %v85 = vld [vmem:[#allocation5 + $0x18] sm:$0xff]
    %v86 = vld [vmem:[#allocation5 + $0x20] sm:$0xff]
    %v87 = vld [vmem:[#allocation5 + $0x28] sm:$0xff]
    %v88 = vld [vmem:[#allocation5 + $0x30] sm:$0xff]
    %v89 = vld [vmem:[#allocation5 + $0x38] sm:$0xff]
    %v90 = vld [vmem:[#allocation5 + $0x40] sm:$0xff]
    %v91 = vld [vmem:[#allocation5 + $0x48] sm:$0xff]
    %v92 = vld [vmem:[#allocation5 + $0x50] sm:$0xff]
    %v93 = vld [vmem:[#allocation5 + $0x58] sm:$0xff]
    %v94 = vld [vmem:[#allocation5 + $0x60] sm:$0xff]
    %v95 = vld [vmem:[#allocation5 + $0x68] sm:$0xff]
    %v96 = vld [vmem:[#allocation5 + $0x70] sm:$0xff]
    %v97 = vld [vmem:[#allocation5 + $0x78] sm:$0xff]
    %v98 = vld [vmem:[#allocation5 + $0x80] sm:$0xff]
    %v99 = vld [vmem:[#allocation5 + $0x88] sm:$0xff]
    %v100 = vld [vmem:[#allocation5 + $0x90] sm:$0xff]
    %v101 = vld [vmem:[#allocation5 + $0x98] sm:$0xff]
    %v102 = vld [vmem:[#allocation5 + $0xa0] sm:$0xff]
    %v103 = vld [vmem:[#allocation5 + $0xa8] sm:$0xff]
    %v104 = vld [vmem:[#allocation5 + $0xb0] sm:$0xff]
    %v105 = vld [vmem:[#allocation5 + $0xb8] sm:$0xff]
    %v106 = vld [vmem:[#allocation5 + $0xc0] sm:$0xff]
    %v107 = vld [vmem:[#allocation5 + $0xc8] sm:$0xff]
    %v108 = vld [vmem:[#allocation5 + $0xd0] sm:$0xff]
    %v109 = vld [vmem:[#allocation5 + $0xd8] sm:$0xff]
    %v110 = vld [vmem:[#allocation5 + $0xe0] sm:$0xff]
    %v111 = vld [vmem:[#allocation5 + $0xe8] sm:$0xff]
    %v112 = vld [vmem:[#allocation5 + $0xf0] sm:$0xff]
    %v113 = vld [vmem:[#allocation5 + $0xf8] sm:$0xff]
    %v114 = vld [vmem:[#allocation5 + $0x100] sm:$0xff]
    %v115 = vld [vmem:[#allocation5 + $0x108] sm:$0xff]
    %v116 = vld [vmem:[#allocation5 + $0x110] sm:$0xff]
    %v117 = vld [vmem:[#allocation5 + $0x118] sm:$0xff]
    %v118 = vld [vmem:[#allocation5 + $0x120] sm:$0xff]
    %v119 = vld [vmem:[#allocation5 + $0x128] sm:$0xff]
    %v120 = vld [vmem:[#allocation5 + $0x130] sm:$0xff]
    %v121 = vld [vmem:[#allocation5 + $0x138] sm:$0xff]
    %v122 = vld [vmem:[#allocation5 + $0x140] sm:$0xff]
    %v123 = vld [vmem:[#allocation5 + $0x148] sm:$0xff]
    %v124 = vld [vmem:[#allocation5 + $0x150] sm:$0xff]
    %v125 = vld [vmem:[#allocation5 + $0x158] sm:$0xff]
    %v126 = vld [vmem:[#allocation5 + $0x160] sm:$0xff]
    %v127 = vld [vmem:[#allocation5 + $0x168] sm:$0xff]
    %v128 = vld [vmem:[#allocation5 + $0x170] sm:$0xff]
    %v129 = vld [vmem:[#allocation5 + $0x178] sm:$0xff]
    %v130 = vld [vmem:[#allocation5 + $0x180] sm:$0xff]
    %v131 = vld [vmem:[#allocation5 + $0x188] sm:$0xff]
    %v132 = vld [vmem:[#allocation5 + $0x190] sm:$0xff]
    %v133 = vld [vmem:[#allocation5 + $0x198] sm:$0xff]
    %v134 = vld [vmem:[#allocation5 + $0x1a0] sm:$0xff]
    %v135 = vld [vmem:[#allocation5 + $0x1a8] sm:$0xff]
    %v136 = vld [vmem:[#allocation5 + $0x1b0] sm:$0xff]
    %v137 = vld [vmem:[#allocation5 + $0x1b8] sm:$0xff]
    %v138 = vld [vmem:[#allocation5 + $0x1c0] sm:$0xff]
    %v139 = vld [vmem:[#allocation5 + $0x1c8] sm:$0xff]
    %v140 = vld [vmem:[#allocation5 + $0x1d0] sm:$0xff]
    %v141 = vld [vmem:[#allocation5 + $0x1d8] sm:$0xff]
    %v142 = vld [vmem:[#allocation5 + $0x1e0] sm:$0xff]
    %v143 = vld [vmem:[#allocation5 + $0x1e8] sm:$0xff]
    %v144 = vld [vmem:[#allocation5 + $0x1f0] sm:$0xff]
    %v145 = vld [vmem:[#allocation5 + $0x1f8] sm:$0xff]
    %v146 = vld [vmem:[%s2] sm:$0x3]
    %v148 = vlaneseq
    %v149 = vshrl.u32 %v148, 7
    %v150 = vsub.s32 0, %v149
    %v151 = vrot.slane %v146, %v150
    %v152 = vlaneseq
    %v153 = vshrl.u32 %v152, 7
    %v154 = vsub.s32 1, %v153
    %v155 = vrot.slane %v146, %v154
    %v222 = vunpack.c.l.b16 %v82
    %v223 = vunpack.c.h.b16 %v82
    %v224 = vunpack.c.l.b16 %v83
    %v225 = vunpack.c.h.b16 %v83
    %v226 = vunpack.c.l.b16 %v84
    %v227 = vunpack.c.h.b16 %v84
    %v228 = vunpack.c.l.b16 %v85
    %v229 = vunpack.c.h.b16 %v85
    %v230 = vunpack.c.l.b16 %v86
    %v231 = vunpack.c.h.b16 %v86
    %v232 = vunpack.c.l.b16 %v87
    %v233 = vunpack.c.h.b16 %v87
    %v234 = vunpack.c.l.b16 %v88
    %v235 = vunpack.c.h.b16 %v88
    %v236 = vunpack.c.l.b16 %v89
    %v237 = vunpack.c.h.b16 %v89
    %v238 = vunpack.c.l.b16 %v90
    %v239 = vunpack.c.h.b16 %v90
    %v240 = vunpack.c.l.b16 %v91
    %v241 = vunpack.c.h.b16 %v91
    %v242 = vunpack.c.l.b16 %v92
    %v243 = vunpack.c.h.b16 %v92
    %v244 = vunpack.c.l.b16 %v93
    %v245 = vunpack.c.h.b16 %v93
    %v246 = vunpack.c.l.b16 %v94
    %v247 = vunpack.c.h.b16 %v94
    %v248 = vunpack.c.l.b16 %v95
    %v249 = vunpack.c.h.b16 %v95
    %v250 = vunpack.c.l.b16 %v96
    %v251 = vunpack.c.h.b16 %v96
    %v252 = vunpack.c.l.b16 %v97
    %v253 = vunpack.c.h.b16 %v97
    %v254 = vunpack.c.l.b16 %v98
    %v255 = vunpack.c.h.b16 %v98
    %v256 = vunpack.c.l.b16 %v99
    %v257 = vunpack.c.h.b16 %v99
    %v258 = vunpack.c.l.b16 %v100
    %v259 = vunpack.c.h.b16 %v100
    %v260 = vunpack.c.l.b16 %v101
    %v261 = vunpack.c.h.b16 %v101
    %v262 = vunpack.c.l.b16 %v102
    %v263 = vunpack.c.h.b16 %v102
    %v264 = vunpack.c.l.b16 %v103
    %v265 = vunpack.c.h.b16 %v103
    %v266 = vunpack.c.l.b16 %v104
    %v267 = vunpack.c.h.b16 %v104
    %v268 = vunpack.c.l.b16 %v105
    %v269 = vunpack.c.h.b16 %v105
    %v270 = vunpack.c.l.b16 %v106
    %v271 = vunpack.c.h.b16 %v106
    %v272 = vunpack.c.l.b16 %v107
    %v273 = vunpack.c.h.b16 %v107
    %v274 = vunpack.c.l.b16 %v108
    %v275 = vunpack.c.h.b16 %v108
    %v276 = vunpack.c.l.b16 %v109
    %v277 = vunpack.c.h.b16 %v109
    %v278 = vunpack.c.l.b16 %v110
    %v279 = vunpack.c.h.b16 %v110
    %v280 = vunpack.c.l.b16 %v111
    %v281 = vunpack.c.h.b16 %v111
    %v282 = vunpack.c.l.b16 %v112
    %v283 = vunpack.c.h.b16 %v112
    %v284 = vunpack.c.l.b16 %v113
    %v285 = vunpack.c.h.b16 %v113
    %v286 = vunpack.c.l.b16 %v114
    %v287 = vunpack.c.h.b16 %v114
    %v288 = vunpack.c.l.b16 %v115
    %v289 = vunpack.c.h.b16 %v115
    %v290 = vunpack.c.l.b16 %v116
    %v291 = vunpack.c.h.b16 %v116
    %v292 = vunpack.c.l.b16 %v117
    %v293 = vunpack.c.h.b16 %v117
    %v294 = vunpack.c.l.b16 %v118
    %v295 = vunpack.c.h.b16 %v118
    %v296 = vunpack.c.l.b16 %v119
    %v297 = vunpack.c.h.b16 %v119
    %v298 = vunpack.c.l.b16 %v120
    %v299 = vunpack.c.h.b16 %v120
    %v300 = vunpack.c.l.b16 %v121
    %v301 = vunpack.c.h.b16 %v121
    %v302 = vunpack.c.l.b16 %v122
    %v303 = vunpack.c.h.b16 %v122
    %v304 = vunpack.c.l.b16 %v123
    %v305 = vunpack.c.h.b16 %v123
    %v306 = vunpack.c.l.b16 %v124
    %v307 = vunpack.c.h.b16 %v124
    %v308 = vunpack.c.l.b16 %v125
    %v309 = vunpack.c.h.b16 %v125
    %v310 = vunpack.c.l.b16 %v126
    %v311 = vunpack.c.h.b16 %v126
    %v312 = vunpack.c.l.b16 %v127
    %v313 = vunpack.c.h.b16 %v127
    %v314 = vunpack.c.l.b16 %v128
    %v315 = vunpack.c.h.b16 %v128
    %v316 = vunpack.c.l.b16 %v129
    %v317 = vunpack.c.h.b16 %v129
    %v318 = vunpack.c.l.b16 %v130
    %v319 = vunpack.c.h.b16 %v130
    %v320 = vunpack.c.l.b16 %v131
    %v321 = vunpack.c.h.b16 %v131
    %v322 = vunpack.c.l.b16 %v132
    %v323 = vunpack.c.h.b16 %v132
    %v324 = vunpack.c.l.b16 %v133
    %v325 = vunpack.c.h.b16 %v133
    %v326 = vunpack.c.l.b16 %v134
    %v327 = vunpack.c.h.b16 %v134
    %v328 = vunpack.c.l.b16 %v135
    %v329 = vunpack.c.h.b16 %v135
    %v330 = vunpack.c.l.b16 %v136
    %v331 = vunpack.c.h.b16 %v136
    %v332 = vunpack.c.l.b16 %v137
    %v333 = vunpack.c.h.b16 %v137
    %v334 = vunpack.c.l.b16 %v138
    %v335 = vunpack.c.h.b16 %v138
    %v336 = vunpack.c.l.b16 %v139
    %v337 = vunpack.c.h.b16 %v139
    %v338 = vunpack.c.l.b16 %v140
    %v339 = vunpack.c.h.b16 %v140
    %v340 = vunpack.c.l.b16 %v141
    %v341 = vunpack.c.h.b16 %v141
    %v342 = vunpack.c.l.b16 %v142
    %v343 = vunpack.c.h.b16 %v142
    %v344 = vunpack.c.l.b16 %v143
    %v345 = vunpack.c.h.b16 %v143
    %v346 = vunpack.c.l.b16 %v144
    %v347 = vunpack.c.h.b16 %v144
    %v348 = vunpack.c.l.b16 %v145
    %v349 = vunpack.c.h.b16 %v145
    %v350 = vpack.c.b16 %v224, %v222
    %v351 = vpack.c.b16 %v225, %v223
    %v352 = vpack.c.b16 %v228, %v226
    %v353 = vpack.c.b16 %v229, %v227
    %v354 = vpack.c.b16 %v232, %v230
    %v355 = vpack.c.b16 %v233, %v231
    %v356 = vpack.c.b16 %v236, %v234
    %v357 = vpack.c.b16 %v237, %v235
    %v358 = vpack.c.b16 %v240, %v238
    %v359 = vpack.c.b16 %v241, %v239
    %v360 = vpack.c.b16 %v244, %v242
    %v361 = vpack.c.b16 %v245, %v243
    %v362 = vpack.c.b16 %v248, %v246
    %v363 = vpack.c.b16 %v249, %v247
    %v364 = vpack.c.b16 %v252, %v250
    %v365 = vpack.c.b16 %v253, %v251
    %v366 = vpack.c.b16 %v256, %v254
    %v367 = vpack.c.b16 %v257, %v255
    %v368 = vpack.c.b16 %v260, %v258
    %v369 = vpack.c.b16 %v261, %v259
    %v370 = vpack.c.b16 %v264, %v262
    %v371 = vpack.c.b16 %v265, %v263
    %v372 = vpack.c.b16 %v268, %v266
    %v373 = vpack.c.b16 %v269, %v267
    %v374 = vpack.c.b16 %v272, %v270
    %v375 = vpack.c.b16 %v273, %v271
    %v376 = vpack.c.b16 %v276, %v274
    %v377 = vpack.c.b16 %v277, %v275
    %v378 = vpack.c.b16 %v280, %v278
    %v379 = vpack.c.b16 %v281, %v279
    %v380 = vpack.c.b16 %v284, %v282
    %v381 = vpack.c.b16 %v285, %v283
    %v382 = vpack.c.b16 %v288, %v286
    %v383 = vpack.c.b16 %v289, %v287
    %v384 = vpack.c.b16 %v292, %v290
    %v385 = vpack.c.b16 %v293, %v291
    %v386 = vpack.c.b16 %v296, %v294
    %v387 = vpack.c.b16 %v297, %v295
    %v388 = vpack.c.b16 %v300, %v298
    %v389 = vpack.c.b16 %v301, %v299
    %v390 = vpack.c.b16 %v304, %v302
    %v391 = vpack.c.b16 %v305, %v303
    %v392 = vpack.c.b16 %v308, %v306
    %v393 = vpack.c.b16 %v309, %v307
    %v394 = vpack.c.b16 %v312, %v310
    %v395 = vpack.c.b16 %v313, %v311
    %v396 = vpack.c.b16 %v316, %v314
    %v397 = vpack.c.b16 %v317, %v315
    %v398 = vpack.c.b16 %v320, %v318
    %v399 = vpack.c.b16 %v321, %v319
    %v400 = vpack.c.b16 %v324, %v322
    %v401 = vpack.c.b16 %v325, %v323
    %v402 = vpack.c.b16 %v328, %v326
    %v403 = vpack.c.b16 %v329, %v327
    %v404 = vpack.c.b16 %v332, %v330
    %v405 = vpack.c.b16 %v333, %v331
    %v406 = vpack.c.b16 %v336, %v334
    %v407 = vpack.c.b16 %v337, %v335
    %v408 = vpack.c.b16 %v340, %v338
    %v409 = vpack.c.b16 %v341, %v339
    %v410 = vpack.c.b16 %v344, %v342
    %v411 = vpack.c.b16 %v345, %v343
    %v412 = vpack.c.b16 %v348, %v346
    %v413 = vpack.c.b16 %v349, %v347
    %478 = vmatprep.subr.bf16.mxu0 %v351
    %479 = vmatpush1.bf16.msra.mxu0 %v350
    %480 = vmatprep.subr.bf16.mxu0 %v353
    %481 = vmatpush1.bf16.msra.mxu0 %v352
    %482 = vmatprep.subr.bf16.mxu0 %v355
    %483 = vmatpush1.bf16.msra.mxu0 %v354
    %484 = vmatprep.subr.bf16.mxu0 %v357
    %485 = vmatpush1.bf16.msra.mxu0 %v356
    %486 = vmatprep.subr.bf16.mxu0 %v359
    %487 = vmatpush1.bf16.msra.mxu0 %v358
    %488 = vmatprep.subr.bf16.mxu0 %v361
    %489 = vmatpush1.bf16.msra.mxu0 %v360
    %490 = vmatprep.subr.bf16.mxu0 %v363
    %491 = vmatpush1.bf16.msra.mxu0 %v362
    %492 = vmatprep.subr.bf16.mxu0 %v365
    %493 = vmatpush1.bf16.msra.mxu0 %v364
    %494 = vmatprep.subr.bf16.mxu0 %v367
    %495 = vmatpush1.bf16.msra.mxu0 %v366
    %496 = vmatprep.subr.bf16.mxu0 %v369
    %497 = vmatpush1.bf16.msra.mxu0 %v368
    %498 = vmatprep.subr.bf16.mxu0 %v371
    %499 = vmatpush1.bf16.msra.mxu0 %v370
    %500 = vmatprep.subr.bf16.mxu0 %v373
    %501 = vmatpush1.bf16.msra.mxu0 %v372
    %502 = vmatprep.subr.bf16.mxu0 %v375
    %503 = vmatpush1.bf16.msra.mxu0 %v374
    %504 = vmatprep.subr.bf16.mxu0 %v377
    %505 = vmatpush1.bf16.msra.mxu0 %v376
    %506 = vmatprep.subr.bf16.mxu0 %v379
    %507 = vmatpush1.bf16.msra.mxu0 %v378
    %508 = vmatprep.subr.bf16.mxu0 %v381
    %509 = vmatpush1.bf16.msra.mxu0 %v380
    %510 = vmatprep.mubr.bf16.mxu0 %v79
    %511 = vmatmul.mubr.bf16.gmra.mrb[0].mxu0 %v78
    %v512 = vpop.f32.mrb[0].mxu0
    %v513 = vadd.f32 %v151, %v512
    %v514 = vpop.f32.mrb[0].mxu0
    %v515 = vadd.f32 %v155, %v514
    %v516 = vpop.f32.mrb[0].mxu0
    %v517 = vpop.f32.mrb[0].mxu0
    %518 = vdwg.mxu0
    %519 = vmatprep.subr.bf16.mxu0 %v383
    %520 = vmatpush1.bf16.msra.mxu0 %v382
    %521 = vmatprep.subr.bf16.mxu0 %v385
    %522 = vmatpush1.bf16.msra.mxu0 %v384
    %523 = vmatprep.subr.bf16.mxu0 %v387
    %524 = vmatpush1.bf16.msra.mxu0 %v386
    %525 = vmatprep.subr.bf16.mxu0 %v389
    %526 = vmatpush1.bf16.msra.mxu0 %v388
    %527 = vmatprep.subr.bf16.mxu0 %v391
    %528 = vmatpush1.bf16.msra.mxu0 %v390
    %529 = vmatprep.subr.bf16.mxu0 %v393
    %530 = vmatpush1.bf16.msra.mxu0 %v392
    %531 = vmatprep.subr.bf16.mxu0 %v395
    %532 = vmatpush1.bf16.msra.mxu0 %v394
    %533 = vmatprep.subr.bf16.mxu0 %v397
    %534 = vmatpush1.bf16.msra.mxu0 %v396
    %535 = vmatprep.subr.bf16.mxu0 %v399
    %536 = vmatpush1.bf16.msra.mxu0 %v398
    %537 = vmatprep.subr.bf16.mxu0 %v401
    %538 = vmatpush1.bf16.msra.mxu0 %v400
    %539 = vmatprep.subr.bf16.mxu0 %v403
    %540 = vmatpush1.bf16.msra.mxu0 %v402
    %541 = vmatprep.subr.bf16.mxu0 %v405
    %542 = vmatpush1.bf16.msra.mxu0 %v404
    %543 = vmatprep.subr.bf16.mxu0 %v407
    %544 = vmatpush1.bf16.msra.mxu0 %v406
    %545 = vmatprep.subr.bf16.mxu0 %v409
    %546 = vmatpush1.bf16.msra.mxu0 %v408
    %547 = vmatprep.subr.bf16.mxu0 %v411
    %548 = vmatpush1.bf16.msra.mxu0 %v410
    %549 = vmatprep.subr.bf16.mxu0 %v413
    %550 = vmatpush1.bf16.msra.mxu0 %v412
    %551 = vmatprep.mubr.bf16.mxu0 %v81
    %552 = vmatmul.mubr.bf16.gmra.mrb[0].mxu0 %v80
    %v553 = vpop.f32.mrb[0].mxu0
    %v554 = vadd.f32 %v513, %v553
    %v555 = vpop.f32.mrb[0].mxu0
    %v556 = vadd.f32 %v515, %v555
    %v557 = vpop.f32.mrb[0].mxu0
    %v558 = vpop.f32.mrb[0].mxu0
    %559 = vdwg.mxu0
    %v560 = vmax.f32 %v554, 0.0
    %v561 = vmax.f32 %v556, 0.0
    %v562 = vpack.c.bf16 %v560, %v560
    %v563 = vpack.c.bf16 %v561, %v561
    %v564 = vld [vmem:[#allocation7] sm:$0xff]
    %v565 = vld [vmem:[#allocation7 + $0x8] sm:$0xff]
    %v566 = vld [vmem:[#allocation7 + $0x10] sm:$0xff]
    %v567 = vld [vmem:[#allocation7 + $0x18] sm:$0xff]
    %v568 = vld [vmem:[#allocation7 + $0x20] sm:$0xff]
    %v569 = vld [vmem:[#allocation7 + $0x28] sm:$0xff]
    %v570 = vld [vmem:[#allocation7 + $0x30] sm:$0xff]
    %v571 = vld [vmem:[#allocation7 + $0x38] sm:$0xff]
    %v572 = vld [vmem:[#allocation7 + $0x40] sm:$0xff]
    %v573 = vld [vmem:[#allocation7 + $0x48] sm:$0xff]
    %v574 = vld [vmem:[#allocation7 + $0x50] sm:$0xff]
    %v575 = vld [vmem:[#allocation7 + $0x58] sm:$0xff]
    %v576 = vld [vmem:[#allocation7 + $0x60] sm:$0xff]
    %v577 = vld [vmem:[#allocation7 + $0x68] sm:$0xff]
    %v578 = vld [vmem:[#allocation7 + $0x70] sm:$0xff]
    %v579 = vld [vmem:[#allocation7 + $0x78] sm:$0xff]
    %v580 = vld [vmem:[#allocation7 + $0x80] sm:$0xff]
    %v581 = vld [vmem:[#allocation7 + $0x88] sm:$0xff]
    %v582 = vld [vmem:[#allocation7 + $0x90] sm:$0xff]
    %v583 = vld [vmem:[#allocation7 + $0x98] sm:$0xff]
    %v584 = vld [vmem:[#allocation7 + $0xa0] sm:$0xff]
    %v585 = vld [vmem:[#allocation7 + $0xa8] sm:$0xff]
    %v586 = vld [vmem:[#allocation7 + $0xb0] sm:$0xff]
    %v587 = vld [vmem:[#allocation7 + $0xb8] sm:$0xff]
    %v588 = vld [vmem:[#allocation7 + $0xc0] sm:$0xff]
    %v589 = vld [vmem:[#allocation7 + $0xc8] sm:$0xff]
    %v590 = vld [vmem:[#allocation7 + $0xd0] sm:$0xff]
    %v591 = vld [vmem:[#allocation7 + $0xd8] sm:$0xff]
    %v592 = vld [vmem:[#allocation7 + $0xe0] sm:$0xff]
    %v593 = vld [vmem:[#allocation7 + $0xe8] sm:$0xff]
    %v594 = vld [vmem:[#allocation7 + $0xf0] sm:$0xff]
    %v595 = vld [vmem:[#allocation7 + $0xf8] sm:$0xff]
    %v596 = vld [vmem:[#allocation7 + $0x100] sm:$0xff]
    %v597 = vld [vmem:[#allocation7 + $0x108] sm:$0xff]
    %v598 = vld [vmem:[#allocation7 + $0x110] sm:$0xff]
    %v599 = vld [vmem:[#allocation7 + $0x118] sm:$0xff]
    %v600 = vld [vmem:[#allocation7 + $0x120] sm:$0xff]
    %v601 = vld [vmem:[#allocation7 + $0x128] sm:$0xff]
    %v602 = vld [vmem:[#allocation7 + $0x130] sm:$0xff]
    %v603 = vld [vmem:[#allocation7 + $0x138] sm:$0xff]
    %v604 = vld [vmem:[#allocation7 + $0x140] sm:$0xff]
    %v605 = vld [vmem:[#allocation7 + $0x148] sm:$0xff]
    %v606 = vld [vmem:[#allocation7 + $0x150] sm:$0xff]
    %v607 = vld [vmem:[#allocation7 + $0x158] sm:$0xff]
    %v608 = vld [vmem:[#allocation7 + $0x160] sm:$0xff]
    %v609 = vld [vmem:[#allocation7 + $0x168] sm:$0xff]
    %v610 = vld [vmem:[#allocation7 + $0x170] sm:$0xff]
    %v611 = vld [vmem:[#allocation7 + $0x178] sm:$0xff]
    %v612 = vld [vmem:[#allocation7 + $0x180] sm:$0xff]
    %v613 = vld [vmem:[#allocation7 + $0x188] sm:$0xff]
    %v614 = vld [vmem:[#allocation7 + $0x190] sm:$0xff]
    %v615 = vld [vmem:[#allocation7 + $0x198] sm:$0xff]
    %v616 = vld [vmem:[#allocation7 + $0x1a0] sm:$0xff]
    %v617 = vld [vmem:[#allocation7 + $0x1a8] sm:$0xff]
    %v618 = vld [vmem:[#allocation7 + $0x1b0] sm:$0xff]
    %v619 = vld [vmem:[#allocation7 + $0x1b8] sm:$0xff]
    %v620 = vld [vmem:[#allocation7 + $0x1c0] sm:$0xff]
    %v621 = vld [vmem:[#allocation7 + $0x1c8] sm:$0xff]
    %v622 = vld [vmem:[#allocation7 + $0x1d0] sm:$0xff]
    %v623 = vld [vmem:[#allocation7 + $0x1d8] sm:$0xff]
    %v624 = vld [vmem:[#allocation7 + $0x1e0] sm:$0xff]
    %v625 = vld [vmem:[#allocation7 + $0x1e8] sm:$0xff]
    %v626 = vld [vmem:[#allocation7 + $0x1f0] sm:$0xff]
    %v627 = vld [vmem:[#allocation7 + $0x1f8] sm:$0xff]
    %v628 = vld [vmem:[#allocation7 + $0x200] sm:$0xff]
    %v629 = vld [vmem:[#allocation7 + $0x208] sm:$0xff]
    %v630 = vld [vmem:[#allocation7 + $0x210] sm:$0xff]
    %v631 = vld [vmem:[#allocation7 + $0x218] sm:$0xff]
    %v632 = vld [vmem:[#allocation7 + $0x220] sm:$0xff]
    %v633 = vld [vmem:[#allocation7 + $0x228] sm:$0xff]
    %v634 = vld [vmem:[#allocation7 + $0x230] sm:$0xff]
    %v635 = vld [vmem:[#allocation7 + $0x238] sm:$0xff]
    %v636 = vld [vmem:[#allocation7 + $0x240] sm:$0xff]
    %v637 = vld [vmem:[#allocation7 + $0x248] sm:$0xff]
    %v638 = vld [vmem:[#allocation7 + $0x250] sm:$0xff]
    %v639 = vld [vmem:[#allocation7 + $0x258] sm:$0xff]
    %v640 = vld [vmem:[#allocation7 + $0x260] sm:$0xff]
    %v641 = vld [vmem:[#allocation7 + $0x268] sm:$0xff]
    %v642 = vld [vmem:[#allocation7 + $0x270] sm:$0xff]
    %v643 = vld [vmem:[#allocation7 + $0x278] sm:$0xff]
    %v644 = vld [vmem:[#allocation7 + $0x280] sm:$0xff]
    %v645 = vld [vmem:[#allocation7 + $0x288] sm:$0xff]
    %v646 = vld [vmem:[#allocation7 + $0x290] sm:$0xff]
    %v647 = vld [vmem:[#allocation7 + $0x298] sm:$0xff]
    %v648 = vld [vmem:[#allocation7 + $0x2a0] sm:$0xff]
    %v649 = vld [vmem:[#allocation7 + $0x2a8] sm:$0xff]
    %v650 = vld [vmem:[#allocation7 + $0x2b0] sm:$0xff]
    %v651 = vld [vmem:[#allocation7 + $0x2b8] sm:$0xff]
    %v652 = vld [vmem:[#allocation7 + $0x2c0] sm:$0xff]
    %v653 = vld [vmem:[#allocation7 + $0x2c8] sm:$0xff]
    %v654 = vld [vmem:[#allocation7 + $0x2d0] sm:$0xff]
    %v655 = vld [vmem:[#allocation7 + $0x2d8] sm:$0xff]
    %v656 = vld [vmem:[#allocation7 + $0x2e0] sm:$0xff]
    %v657 = vld [vmem:[#allocation7 + $0x2e8] sm:$0xff]
    %v658 = vld [vmem:[#allocation7 + $0x2f0] sm:$0xff]
    %v659 = vld [vmem:[#allocation7 + $0x2f8] sm:$0xff]
    %v660 = vld [vmem:[%s4] sm:$0x3f]
    %v662 = vlaneseq
    %v663 = vshrl.u32 %v662, 7
    %v664 = vsub.s32 0, %v663
    %v665 = vrot.slane %v660, %v664
    %v666 = vlaneseq
    %v667 = vshrl.u32 %v666, 7
    %v668 = vsub.s32 1, %v667
    %v669 = vrot.slane %v660, %v668
    %v670 = vlaneseq
    %v671 = vshrl.u32 %v670, 7
    %v672 = vsub.s32 2, %v671
    %v673 = vrot.slane %v660, %v672
    %v674 = vlaneseq
    %v675 = vshrl.u32 %v674, 7
    %v676 = vsub.s32 3, %v675
    %v677 = vrot.slane %v660, %v676
    %v678 = vlaneseq
    %v679 = vshrl.u32 %v678, 7
    %v680 = vsub.s32 4, %v679
    %v681 = vrot.slane %v660, %v680
    %v682 = vlaneseq
    %v683 = vshrl.u32 %v682, 7
    %v684 = vsub.s32 5, %v683
    %v685 = vrot.slane %v660, %v684
    %v788 = vunpack.c.l.b16 %v564
    %v789 = vunpack.c.h.b16 %v564
    %v790 = vunpack.c.l.b16 %v565
    %v791 = vunpack.c.h.b16 %v565
    %v792 = vunpack.c.l.b16 %v566
    %v793 = vunpack.c.h.b16 %v566
    %v794 = vunpack.c.l.b16 %v567
    %v795 = vunpack.c.h.b16 %v567
    %v796 = vunpack.c.l.b16 %v568
    %v797 = vunpack.c.h.b16 %v568
    %v798 = vunpack.c.l.b16 %v569
    %v799 = vunpack.c.h.b16 %v569
    %v800 = vunpack.c.l.b16 %v570
    %v801 = vunpack.c.h.b16 %v570
    %v802 = vunpack.c.l.b16 %v571
    %v803 = vunpack.c.h.b16 %v571
    %v804 = vunpack.c.l.b16 %v572
    %v805 = vunpack.c.h.b16 %v572
    %v806 = vunpack.c.l.b16 %v573
    %v807 = vunpack.c.h.b16 %v573
    %v808 = vunpack.c.l.b16 %v574
    %v809 = vunpack.c.h.b16 %v574
    %v810 = vunpack.c.l.b16 %v575
    %v811 = vunpack.c.h.b16 %v575
    %v812 = vunpack.c.l.b16 %v576
    %v813 = vunpack.c.h.b16 %v576
    %v814 = vunpack.c.l.b16 %v577
    %v815 = vunpack.c.h.b16 %v577
    %v816 = vunpack.c.l.b16 %v578
    %v817 = vunpack.c.h.b16 %v578
    %v818 = vunpack.c.l.b16 %v579
    %v819 = vunpack.c.h.b16 %v579
    %v820 = vunpack.c.l.b16 %v580
    %v821 = vunpack.c.h.b16 %v580
    %v822 = vunpack.c.l.b16 %v581
    %v823 = vunpack.c.h.b16 %v581
    %v824 = vunpack.c.l.b16 %v582
    %v825 = vunpack.c.h.b16 %v582
    %v826 = vunpack.c.l.b16 %v583
    %v827 = vunpack.c.h.b16 %v583
    %v828 = vunpack.c.l.b16 %v584
    %v829 = vunpack.c.h.b16 %v584
    %v830 = vunpack.c.l.b16 %v585
    %v831 = vunpack.c.h.b16 %v585
    %v832 = vunpack.c.l.b16 %v586
    %v833 = vunpack.c.h.b16 %v586
    %v834 = vunpack.c.l.b16 %v587
    %v835 = vunpack.c.h.b16 %v587
    %v836 = vunpack.c.l.b16 %v588
    %v837 = vunpack.c.h.b16 %v588
    %v838 = vunpack.c.l.b16 %v589
    %v839 = vunpack.c.h.b16 %v589
    %v840 = vunpack.c.l.b16 %v590
    %v841 = vunpack.c.h.b16 %v590
    %v842 = vunpack.c.l.b16 %v591
    %v843 = vunpack.c.h.b16 %v591
    %v844 = vunpack.c.l.b16 %v592
    %v845 = vunpack.c.h.b16 %v592
    %v846 = vunpack.c.l.b16 %v593
    %v847 = vunpack.c.h.b16 %v593
    %v848 = vunpack.c.l.b16 %v594
    %v849 = vunpack.c.h.b16 %v594
    %v850 = vunpack.c.l.b16 %v595
    %v851 = vunpack.c.h.b16 %v595
    %v852 = vunpack.c.l.b16 %v596
    %v853 = vunpack.c.h.b16 %v596
    %v854 = vunpack.c.l.b16 %v597
    %v855 = vunpack.c.h.b16 %v597
    %v856 = vunpack.c.l.b16 %v598
    %v857 = vunpack.c.h.b16 %v598
    %v858 = vunpack.c.l.b16 %v599
    %v859 = vunpack.c.h.b16 %v599
    %v860 = vunpack.c.l.b16 %v600
    %v861 = vunpack.c.h.b16 %v600
    %v862 = vunpack.c.l.b16 %v601
    %v863 = vunpack.c.h.b16 %v601
    %v864 = vunpack.c.l.b16 %v602
    %v865 = vunpack.c.h.b16 %v602
    %v866 = vunpack.c.l.b16 %v603
    %v867 = vunpack.c.h.b16 %v603
    %v868 = vunpack.c.l.b16 %v604
    %v869 = vunpack.c.h.b16 %v604
    %v870 = vunpack.c.l.b16 %v605
    %v871 = vunpack.c.h.b16 %v605
    %v872 = vunpack.c.l.b16 %v606
    %v873 = vunpack.c.h.b16 %v606
    %v874 = vunpack.c.l.b16 %v607
    %v875 = vunpack.c.h.b16 %v607
    %v876 = vunpack.c.l.b16 %v608
    %v877 = vunpack.c.h.b16 %v608
    %v878 = vunpack.c.l.b16 %v609
    %v879 = vunpack.c.h.b16 %v609
    %v880 = vunpack.c.l.b16 %v610
    %v881 = vunpack.c.h.b16 %v610
    %v882 = vunpack.c.l.b16 %v611
    %v883 = vunpack.c.h.b16 %v611
    %v884 = vunpack.c.l.b16 %v612
    %v885 = vunpack.c.h.b16 %v612
    %v886 = vunpack.c.l.b16 %v613
    %v887 = vunpack.c.h.b16 %v613
    %v888 = vunpack.c.l.b16 %v614
    %v889 = vunpack.c.h.b16 %v614
    %v890 = vunpack.c.l.b16 %v615
    %v891 = vunpack.c.h.b16 %v615
    %v892 = vunpack.c.l.b16 %v616
    %v893 = vunpack.c.h.b16 %v616
    %v894 = vunpack.c.l.b16 %v617
    %v895 = vunpack.c.h.b16 %v617
    %v896 = vunpack.c.l.b16 %v618
    %v897 = vunpack.c.h.b16 %v618
    %v898 = vunpack.c.l.b16 %v619
    %v899 = vunpack.c.h.b16 %v619
    %v900 = vunpack.c.l.b16 %v620
    %v901 = vunpack.c.h.b16 %v620
    %v902 = vunpack.c.l.b16 %v621
    %v903 = vunpack.c.h.b16 %v621
    %v904 = vunpack.c.l.b16 %v622
    %v905 = vunpack.c.h.b16 %v622
    %v906 = vunpack.c.l.b16 %v623
    %v907 = vunpack.c.h.b16 %v623
    %v908 = vunpack.c.l.b16 %v624
    %v909 = vunpack.c.h.b16 %v624
    %v910 = vunpack.c.l.b16 %v625
    %v911 = vunpack.c.h.b16 %v625
    %v912 = vunpack.c.l.b16 %v626
    %v913 = vunpack.c.h.b16 %v626
    %v914 = vunpack.c.l.b16 %v627
    %v915 = vunpack.c.h.b16 %v627
    %v916 = vunpack.c.l.b16 %v628
    %v917 = vunpack.c.h.b16 %v628
    %v918 = vunpack.c.l.b16 %v629
    %v919 = vunpack.c.h.b16 %v629
    %v920 = vunpack.c.l.b16 %v630
    %v921 = vunpack.c.h.b16 %v630
    %v922 = vunpack.c.l.b16 %v631
    %v923 = vunpack.c.h.b16 %v631
    %v924 = vunpack.c.l.b16 %v632
    %v925 = vunpack.c.h.b16 %v632
    %v926 = vunpack.c.l.b16 %v633
    %v927 = vunpack.c.h.b16 %v633
    %v928 = vunpack.c.l.b16 %v634
    %v929 = vunpack.c.h.b16 %v634
    %v930 = vunpack.c.l.b16 %v635
    %v931 = vunpack.c.h.b16 %v635
    %v932 = vunpack.c.l.b16 %v636
    %v933 = vunpack.c.h.b16 %v636
    %v934 = vunpack.c.l.b16 %v637
    %v935 = vunpack.c.h.b16 %v637
    %v936 = vunpack.c.l.b16 %v638
    %v937 = vunpack.c.h.b16 %v638
    %v938 = vunpack.c.l.b16 %v639
    %v939 = vunpack.c.h.b16 %v639
    %v940 = vunpack.c.l.b16 %v640
    %v941 = vunpack.c.h.b16 %v640
    %v942 = vunpack.c.l.b16 %v641
    %v943 = vunpack.c.h.b16 %v641
    %v944 = vunpack.c.l.b16 %v642
    %v945 = vunpack.c.h.b16 %v642
    %v946 = vunpack.c.l.b16 %v643
    %v947 = vunpack.c.h.b16 %v643
    %v948 = vunpack.c.l.b16 %v644
    %v949 = vunpack.c.h.b16 %v644
    %v950 = vunpack.c.l.b16 %v645
    %v951 = vunpack.c.h.b16 %v645
    %v952 = vunpack.c.l.b16 %v646
    %v953 = vunpack.c.h.b16 %v646
    %v954 = vunpack.c.l.b16 %v647
    %v955 = vunpack.c.h.b16 %v647
    %v956 = vunpack.c.l.b16 %v648
    %v957 = vunpack.c.h.b16 %v648
    %v958 = vunpack.c.l.b16 %v649
    %v959 = vunpack.c.h.b16 %v649
    %v960 = vunpack.c.l.b16 %v650
    %v961 = vunpack.c.h.b16 %v650
    %v962 = vunpack.c.l.b16 %v651
    %v963 = vunpack.c.h.b16 %v651
    %v964 = vunpack.c.l.b16 %v652
    %v965 = vunpack.c.h.b16 %v652
    %v966 = vunpack.c.l.b16 %v653
    %v967 = vunpack.c.h.b16 %v653
    %v968 = vunpack.c.l.b16 %v654
    %v969 = vunpack.c.h.b16 %v654
    %v970 = vunpack.c.l.b16 %v655
    %v971 = vunpack.c.h.b16 %v655
    %v972 = vunpack.c.l.b16 %v656
    %v973 = vunpack.c.h.b16 %v656
    %v974 = vunpack.c.l.b16 %v657
    %v975 = vunpack.c.h.b16 %v657
    %v976 = vunpack.c.l.b16 %v658
    %v977 = vunpack.c.h.b16 %v658
    %v978 = vunpack.c.l.b16 %v659
    %v979 = vunpack.c.h.b16 %v659
    %v980 = vpack.c.b16 %v794, %v788
    %v981 = vpack.c.b16 %v795, %v789
    %v982 = vpack.c.b16 %v796, %v790
    %v983 = vpack.c.b16 %v797, %v791
    %v984 = vpack.c.b16 %v798, %v792
    %v985 = vpack.c.b16 %v799, %v793
    %v986 = vpack.c.b16 %v806, %v800
    %v987 = vpack.c.b16 %v807, %v801
    %v988 = vpack.c.b16 %v808, %v802
    %v989 = vpack.c.b16 %v809, %v803
    %v990 = vpack.c.b16 %v810, %v804
    %v991 = vpack.c.b16 %v811, %v805
    %v992 = vpack.c.b16 %v818, %v812
    %v993 = vpack.c.b16 %v819, %v813
    %v994 = vpack.c.b16 %v820, %v814
    %v995 = vpack.c.b16 %v821, %v815
    %v996 = vpack.c.b16 %v822, %v816
    %v997 = vpack.c.b16 %v823, %v817
    %v998 = vpack.c.b16 %v830, %v824
    %v999 = vpack.c.b16 %v831, %v825
    %v1000 = vpack.c.b16 %v832, %v826
    %v1001 = vpack.c.b16 %v833, %v827
    %v1002 = vpack.c.b16 %v834, %v828
    %v1003 = vpack.c.b16 %v835, %v829
    %v1004 = vpack.c.b16 %v842, %v836
    %v1005 = vpack.c.b16 %v843, %v837
    %v1006 = vpack.c.b16 %v844, %v838
    %v1007 = vpack.c.b16 %v845, %v839
    %v1008 = vpack.c.b16 %v846, %v840
    %v1009 = vpack.c.b16 %v847, %v841
    %v1010 = vpack.c.b16 %v854, %v848
    %v1011 = vpack.c.b16 %v855, %v849
    %v1012 = vpack.c.b16 %v856, %v850
    %v1013 = vpack.c.b16 %v857, %v851
    %v1014 = vpack.c.b16 %v858, %v852
    %v1015 = vpack.c.b16 %v859, %v853
    %v1016 = vpack.c.b16 %v866, %v860
    %v1017 = vpack.c.b16 %v867, %v861
    %v1018 = vpack.c.b16 %v868, %v862
    %v1019 = vpack.c.b16 %v869, %v863
    %v1020 = vpack.c.b16 %v870, %v864
    %v1021 = vpack.c.b16 %v871, %v865
    %v1022 = vpack.c.b16 %v878, %v872
    %v1023 = vpack.c.b16 %v879, %v873
    %v1024 = vpack.c.b16 %v880, %v874
    %v1025 = vpack.c.b16 %v881, %v875
    %v1026 = vpack.c.b16 %v882, %v876
    %v1027 = vpack.c.b16 %v883, %v877
    %v1028 = vpack.c.b16 %v890, %v884
    %v1029 = vpack.c.b16 %v891, %v885
    %v1030 = vpack.c.b16 %v892, %v886
    %v1031 = vpack.c.b16 %v893, %v887
    %v1032 = vpack.c.b16 %v894, %v888
    %v1033 = vpack.c.b16 %v895, %v889
    %v1034 = vpack.c.b16 %v902, %v896
    %v1035 = vpack.c.b16 %v903, %v897
    %v1036 = vpack.c.b16 %v904, %v898
    %v1037 = vpack.c.b16 %v905, %v899
    %v1038 = vpack.c.b16 %v906, %v900
    %v1039 = vpack.c.b16 %v907, %v901
    %v1040 = vpack.c.b16 %v914, %v908
    %v1041 = vpack.c.b16 %v915, %v909
    %v1042 = vpack.c.b16 %v916, %v910
    %v1043 = vpack.c.b16 %v917, %v911
    %v1044 = vpack.c.b16 %v918, %v912
    %v1045 = vpack.c.b16 %v919, %v913
    %v1046 = vpack.c.b16 %v926, %v920
    %v1047 = vpack.c.b16 %v927, %v921
    %v1048 = vpack.c.b16 %v928, %v922
    %v1049 = vpack.c.b16 %v929, %v923
    %v1050 = vpack.c.b16 %v930, %v924
    %v1051 = vpack.c.b16 %v931, %v925
    %v1052 = vpack.c.b16 %v938, %v932
    %v1053 = vpack.c.b16 %v939, %v933
    %v1054 = vpack.c.b16 %v940, %v934
    %v1055 = vpack.c.b16 %v941, %v935
    %v1056 = vpack.c.b16 %v942, %v936
    %v1057 = vpack.c.b16 %v943, %v937
    %v1058 = vpack.c.b16 %v950, %v944
    %v1059 = vpack.c.b16 %v951, %v945
    %v1060 = vpack.c.b16 %v952, %v946
    %v1061 = vpack.c.b16 %v953, %v947
    %v1062 = vpack.c.b16 %v954, %v948
    %v1063 = vpack.c.b16 %v955, %v949
    %v1064 = vpack.c.b16 %v962, %v956
    %v1065 = vpack.c.b16 %v963, %v957
    %v1066 = vpack.c.b16 %v964, %v958
    %v1067 = vpack.c.b16 %v965, %v959
    %v1068 = vpack.c.b16 %v966, %v960
    %v1069 = vpack.c.b16 %v967, %v961
    %v1070 = vpack.c.b16 %v974, %v968
    %v1071 = vpack.c.b16 %v975, %v969
    %v1072 = vpack.c.b16 %v976, %v970
    %v1073 = vpack.c.b16 %v977, %v971
    %v1074 = vpack.c.b16 %v978, %v972
    %v1075 = vpack.c.b16 %v979, %v973
    %1172 = vmatprep.subr.bf16.mxu0 %v981
    %1173 = vmatpush1.bf16.msra.mxu0 %v980
    %1174 = vmatprep.subr.bf16.mxu0 %v987
    %1175 = vmatpush1.bf16.msra.mxu0 %v986
    %1176 = vmatprep.subr.bf16.mxu0 %v993
    %1177 = vmatpush1.bf16.msra.mxu0 %v992
    %1178 = vmatprep.subr.bf16.mxu0 %v999
    %1179 = vmatpush1.bf16.msra.mxu0 %v998
    %1180 = vmatprep.subr.bf16.mxu0 %v1005
    %1181 = vmatpush1.bf16.msra.mxu0 %v1004
    %1182 = vmatprep.subr.bf16.mxu0 %v1011
    %1183 = vmatpush1.bf16.msra.mxu0 %v1010
    %1184 = vmatprep.subr.bf16.mxu0 %v1017
    %1185 = vmatpush1.bf16.msra.mxu0 %v1016
    %1186 = vmatprep.subr.bf16.mxu0 %v1023
    %1187 = vmatpush1.bf16.msra.mxu0 %v1022
    %1188 = vmatprep.subr.bf16.mxu0 %v1029
    %1189 = vmatpush1.bf16.msra.mxu0 %v1028
    %1190 = vmatprep.subr.bf16.mxu0 %v1035
    %1191 = vmatpush1.bf16.msra.mxu0 %v1034
    %1192 = vmatprep.subr.bf16.mxu0 %v1041
    %1193 = vmatpush1.bf16.msra.mxu0 %v1040
    %1194 = vmatprep.subr.bf16.mxu0 %v1047
    %1195 = vmatpush1.bf16.msra.mxu0 %v1046
    %1196 = vmatprep.subr.bf16.mxu0 %v1053
    %1197 = vmatpush1.bf16.msra.mxu0 %v1052
    %1198 = vmatprep.subr.bf16.mxu0 %v1059
    %1199 = vmatpush1.bf16.msra.mxu0 %v1058
    %1200 = vmatprep.subr.bf16.mxu0 %v1065
    %1201 = vmatpush1.bf16.msra.mxu0 %v1064
    %1202 = vmatprep.subr.bf16.mxu0 %v1071
    %1203 = vmatpush1.bf16.msra.mxu0 %v1070
    %1204 = vmatprep.mubr.bf16.mxu0 %v563
    %1205 = vmatmul.mubr.bf16.gmra.mrb[0].mxu0 %v562
    %v1206 = vpop.f32.mrb[0].mxu0
    %v1207 = vadd.f32 %v665, %v1206
    %v1208 = vpop.f32.mrb[0].mxu0
    %v1209 = vadd.f32 %v669, %v1208
    %v1210 = vpop.f32.mrb[0].mxu0
    %v1211 = vpop.f32.mrb[0].mxu0
    %1212 = vdwg.mxu0
    %1213 = vmatprep.subr.bf16.mxu0 %v983
    %1214 = vmatpush1.bf16.msra.mxu0 %v982
    %1215 = vmatprep.subr.bf16.mxu0 %v989
    %1216 = vmatpush1.bf16.msra.mxu0 %v988
    %1217 = vmatprep.subr.bf16.mxu0 %v995
    %1218 = vmatpush1.bf16.msra.mxu0 %v994
    %1219 = vmatprep.subr.bf16.mxu0 %v1001
    %1220 = vmatpush1.bf16.msra.mxu0 %v1000
    %1221 = vmatprep.subr.bf16.mxu0 %v1007
    %1222 = vmatpush1.bf16.msra.mxu0 %v1006
    %1223 = vmatprep.subr.bf16.mxu0 %v1013
    %1224 = vmatpush1.bf16.msra.mxu0 %v1012
    %1225 = vmatprep.subr.bf16.mxu0 %v1019
    %1226 = vmatpush1.bf16.msra.mxu0 %v1018
    %1227 = vmatprep.subr.bf16.mxu0 %v1025
    %1228 = vmatpush1.bf16.msra.mxu0 %v1024
    %1229 = vmatprep.subr.bf16.mxu0 %v1031
    %1230 = vmatpush1.bf16.msra.mxu0 %v1030
    %1231 = vmatprep.subr.bf16.mxu0 %v1037
    %1232 = vmatpush1.bf16.msra.mxu0 %v1036
    %1233 = vmatprep.subr.bf16.mxu0 %v1043
    %1234 = vmatpush1.bf16.msra.mxu0 %v1042
    %1235 = vmatprep.subr.bf16.mxu0 %v1049
    %1236 = vmatpush1.bf16.msra.mxu0 %v1048
    %1237 = vmatprep.subr.bf16.mxu0 %v1055
    %1238 = vmatpush1.bf16.msra.mxu0 %v1054
    %1239 = vmatprep.subr.bf16.mxu0 %v1061
    %1240 = vmatpush1.bf16.msra.mxu0 %v1060
    %1241 = vmatprep.subr.bf16.mxu0 %v1067
    %1242 = vmatpush1.bf16.msra.mxu0 %v1066
    %1243 = vmatprep.subr.bf16.mxu0 %v1073
    %1244 = vmatpush1.bf16.msra.mxu0 %v1072
    %1245 = vmatprep.mubr.bf16.mxu0 %v563
    %1246 = vmatmul.mubr.bf16.gmra.mrb[0].mxu0 %v562
    %v1247 = vpop.f32.mrb[0].mxu0
    %v1248 = vadd.f32 %v673, %v1247
    %v1249 = vpop.f32.mrb[0].mxu0
    %v1250 = vadd.f32 %v677, %v1249
    %v1251 = vpop.f32.mrb[0].mxu0
    %v1252 = vpop.f32.mrb[0].mxu0
    %1253 = vdwg.mxu0
    %1254 = vmatprep.subr.bf16.mxu0 %v985
    %1255 = vmatpush1.bf16.msra.mxu0 %v984
    %1256 = vmatprep.subr.bf16.mxu0 %v991
    %1257 = vmatpush1.bf16.msra.mxu0 %v990
    %1258 = vmatprep.subr.bf16.mxu0 %v997
    %1259 = vmatpush1.bf16.msra.mxu0 %v996
    %1260 = vmatprep.subr.bf16.mxu0 %v1003
    %1261 = vmatpush1.bf16.msra.mxu0 %v1002
    %1262 = vmatprep.subr.bf16.mxu0 %v1009
    %1263 = vmatpush1.bf16.msra.mxu0 %v1008
    %1264 = vmatprep.subr.bf16.mxu0 %v1015
    %1265 = vmatpush1.bf16.msra.mxu0 %v1014
    %1266 = vmatprep.subr.bf16.mxu0 %v1021
    %1267 = vmatpush1.bf16.msra.mxu0 %v1020
    %1268 = vmatprep.subr.bf16.mxu0 %v1027
    %1269 = vmatpush1.bf16.msra.mxu0 %v1026
    %1270 = vmatprep.subr.bf16.mxu0 %v1033
    %1271 = vmatpush1.bf16.msra.mxu0 %v1032
    %1272 = vmatprep.subr.bf16.mxu0 %v1039
    %1273 = vmatpush1.bf16.msra.mxu0 %v1038
    %1274 = vmatprep.subr.bf16.mxu0 %v1045
    %1275 = vmatpush1.bf16.msra.mxu0 %v1044
    %1276 = vmatprep.subr.bf16.mxu0 %v1051
    %1277 = vmatpush1.bf16.msra.mxu0 %v1050
    %1278 = vmatprep.subr.bf16.mxu0 %v1057
    %1279 = vmatpush1.bf16.msra.mxu0 %v1056
    %1280 = vmatprep.subr.bf16.mxu0 %v1063
    %1281 = vmatpush1.bf16.msra.mxu0 %v1062
    %1282 = vmatprep.subr.bf16.mxu0 %v1069
    %1283 = vmatpush1.bf16.msra.mxu0 %v1068
    %1284 = vmatprep.subr.bf16.mxu0 %v1075
    %1285 = vmatpush1.bf16.msra.mxu0 %v1074
    %1286 = vmatprep.mubr.bf16.mxu0 %v563
    %1287 = vmatmul.mubr.bf16.gmra.mrb[0].mxu0 %v562
    %v1288 = vpop.f32.mrb[0].mxu0
    %v1289 = vadd.f32 %v681, %v1288
    %v1290 = vpop.f32.mrb[0].mxu0
    %v1291 = vadd.f32 %v685, %v1290
    %v1292 = vpop.f32.mrb[0].mxu0
    %v1293 = vpop.f32.mrb[0].mxu0
    %1294 = vdwg.mxu0
    %v1301 = vcombine.low %v1207, %v1209
    %v1302 = vcombine.high %v1207, %v1209
    %v1303 = vcombine.low %v1248, %v1250
    %v1304 = vcombine.high %v1248, %v1250
    %v1305 = vcombine.low %v1289, %v1291
    %v1306 = vcombine.high %v1289, %v1291
    %1313 = vst [vmem:[#allocation8] sm:$0xff] %v1301
    %1314 = vst [vmem:[#allocation8 + $0x8] sm:$0xff] %v1303
    %1315 = vst [vmem:[#allocation8 + $0x10] sm:$0xff] %v1305
    %1316 = vst [vmem:[#allocation8 + $0x18] sm:$0xff] %v1302
    %1317 = vst [vmem:[#allocation8 + $0x20] sm:$0xff] %v1304
    %1318 = vst [vmem:[#allocation8 + $0x28] sm:$0xff] %v1306
    // Predicated region
    $region34: #{tpu_custom_call.1} parent=1 // pred_check
      _
    $region35: #{tpu_custom_call.1} parent=1 // pred_check_branch
      %1320 = sbr.rel (0) target = $region37
    $region36: #{tpu_custom_call.1} parent=1 // pred_region
      %s1322 = ssub.s32 768, 384
      %1323 = vsyncadd [#allocation4], %s1322
      %s1324 = sshll.u32 [#allocation8], 4
      %s1325 = int_to_ptr.vmem [resolvable:$true] %s1324
      %1330 = dma.vmem_to_hbm [thread:$0]  %s1325, 384, %s5, [#allocation4], 384, 384, 24
    $region37: #{tpu_custom_call.1} parent=1 // pred_fallthru
      _
    // Predicated region
    $region38: #{tpu_custom_call.1} parent=1 // pred_check
      _
    $region39: #{tpu_custom_call.1} parent=1 // pred_check_branch
      %1332 = sbr.rel (0) target = $region41
    $region40: #{tpu_custom_call.1} parent=1 // pred_region
      %1333 = dma.done [#allocation4], 768
    $region41: #{tpu_custom_call.1} parent=1 // pred_fallthru
      _
    %1334 = vsyncpa [#allocation3], 1
    %1335 = vsyncpa [#allocation6], 1
    %1336 = vsyncpa [#allocation4], 1

</llo_original>
